<compile_context>
chip_gen: v6e
topology: v6e:2x2x1
jax: 0.10.0
libtpu: 0.0.40
codegen_flags: <defaults>
</compile_context>

<pallas_src>
from functools import partial

import jax
import jax.numpy as jnp
from jax import lax
from jax.experimental import pallas as pl
from jax.experimental.pallas import tpu as pltpu


def _round_up(x, m):
    return ((x + m - 1) // m) * m


def _lane_plan(width):
    """Static plan for presenting a (rows, W) array to the kernel.

    Returns (ncols, lane, seg, padw, pack):
      ncols: number of `lane`-wide column blocks in the grid,
      lane:  lane width of each block,
      seg:   segment width reversed *inside* a block when flipping,
      padw:  right zero-padding added to W (fallback path only),
      pack:  consecutive rows folded into the lane dim (W < 128 pow2).
    """
    if width % 128 == 0:
        return width // 128, 128, 128, 0, 1
    if width < 128 and (width & (width - 1)) == 0:
        return 1, 128, width, 0, 128 // width
    # TODO(synk): generic fallback pads W to a power of two >= 128; correct but
    # inflates HBM traffic for odd widths.
    wp = max(128, pl.next_power_of_2(width))
    return 1, wp, wp, wp - width, 1


def _reverse_segments(x, seg, padw):
    """Reverse every `seg`-wide segment along the last axis of a block, then
    (fallback path only) rotate left by `padw` so the payload starts at lane 0.

    `seg` and x.shape[-1] are powers of two, seg <= x.shape[-1].  Pure data
    movement: 2 XLU lane rotations + ~4 VPU ops per element per stage.  The
    roll direction convention is probed once per block (`fwd`), so the
    per-stage select mask is simply ((lane & k) != 0) XOR fwd.
    """
    w = x.shape[-1]
    axis = x.ndim - 1
    if seg <= 1 and padw == 0:
        return x
    lane = lax.broadcasted_iota(jnp.int32, x.shape, axis)
    # fwd == True  <=>  pltpu.roll(v, s)[i] == v[(i + s) % w]
    fwd = pltpu.roll(lane, shift=1, axis=axis) == ((lane + 1) % w)

    k = 1
    while k < seg:
        pick_a = jnp.logical_xor((lane & k) != 0, fwd)
        x = jnp.where(pick_a,
                      pltpu.roll(x, shift=k, axis=axis),
                      pltpu.roll(x, shift=w - k, axis=axis))
        k *= 2

    if padw:
        # out[i] = x[i + padw]: undo the right zero-padding after a full reversal.
        x = jnp.where(fwd,
                      pltpu.roll(x, shift=padw, axis=axis),
                      pltpu.roll(x, shift=w - padw, axis=axis))
    return x


def _pair_hflip_kernel(seg, padw, flag_ref, a_ref, b_ref, ao_ref, bo_ref):
    """a: row-tiled primary tensor.  b: small secondary tensor, resident across
    the row axis (grid axis 1) and written once per column block (row tile 0).
    flag_ref: SMEM int32[1]; nonzero -> reverse segments, zero -> pure copy."""
    do_flip = flag_ref[0] != 0
    keep = jnp.logical_not(do_flip)
    first_row_tile = pl.program_id(1) == 0

    @pl.when(do_flip)
    def _():
        ao_ref[...] = _reverse_segments(a_ref[...], seg, padw)

    @pl.when(keep)
    def _():
        ao_ref[...] = a_ref[...]

    @pl.when(jnp.logical_and(do_flip, first_row_tile))
    def _():
        bo_ref[...] = _reverse_segments(b_ref[...], seg, padw)

    @pl.when(jnp.logical_and(keep, first_row_tile))
    def _():
        bo_ref[...] = b_ref[...]


def _prep(x2d, padw, pack):
    """Right-pad W, then fold `pack` rows into lanes (padding rows if needed)."""
    rows, width = x2d.shape
    if padw:
        x2d = jnp.pad(x2d, ((0, 0), (0, padw)))
    if pack > 1:
        rpad = _round_up(rows, pack)
        if rpad != rows:
            x2d = jnp.pad(x2d, ((0, rpad - rows), (0, 0)))
        x2d = x2d.reshape(rpad // pack, (width + padw) * pack)
    return x2d


def _unprep(y, rows, width, pack):
    if pack > 1:
        y = y.reshape(-1, width)
    return y[:rows, :width]


def _hw_budget():
    """(target block bytes, vmem limit bytes): conservative on 64-MiB-VMEM chips
    (v7x), bigger blocks on 128-MiB-VMEM chips (v5e/v6e)."""
    try:
        big_vmem = pltpu.get_tpu_info().vmem_capacity_bytes >= (128 << 20)
    except Exception:  # unknown chip / interpret mode -> stay conservative
        big_vmem = False
    return (4 << 20, 64 << 20) if big_vmem else (1 << 20, 32 << 20)


def _pair_hflip_2d(a, b, flag):
    """Conditionally (per runtime `flag`) reverse the last axis of two 2-D
    arrays sharing the same width.  `a` is row-tiled across the grid; `b` is a
    single VMEM-resident block (caller guarantees it is small)."""
    rows_a, width = a.shape
    rows_b, width_b = b.shape
    assert width == width_b, (width, width_b)

    ncols, lane, seg, padw, pack = _lane_plan(width)
    a_p = _prep(a, padw, pack)
    b_p = _prep(b, padw, pack)

    target_bytes, vmem_limit = _hw_budget()
    ra = a_p.shape[0]
    max_tile = max(8, (target_bytes // (lane * a_p.dtype.itemsize)) // 8 * 8)
    if ra <= max_tile:
        tile = ra
    else:
        tile = max_tile
        rpad = _round_up(ra, tile)
        if rpad != ra:
            a_p = jnp.pad(a_p, ((0, rpad - ra), (0, 0)))
            ra = rpad
    rb = b_p.shape[0]

    def _col(j, flag_ref):
        # Coarse mirroring by DMA addressing: when flipping, read column block
        # (ncols-1-j); the kernel then only reverses within one 128-lane block.
        f = (flag_ref[0] != 0).astype(jnp.int32)
        return f * (ncols - 1 - j) + (1 - f) * j

    grid = (ncols, ra // tile)

    a_out, b_out = pl.pallas_call(
        partial(_pair_hflip_kernel, seg, padw),
        out_shape=(jax.ShapeDtypeStruct(a_p.shape, a_p.dtype),
                   jax.ShapeDtypeStruct(b_p.shape, b_p.dtype)),
        grid_spec=pltpu.PrefetchScalarGridSpec(
            num_scalar_prefetch=1,           # `flag` lands in SMEM
            grid=grid,                       # (column blocks, row tiles)
            in_specs=[
                pl.BlockSpec((tile, lane), lambda j, i, fl: (i, _col(j, fl))),
                pl.BlockSpec((rb, lane), lambda j, i, fl: (0, _col(j, fl))),
            ],
            out_specs=(
                pl.BlockSpec((tile, lane), lambda j, i, fl: (i, j)),
                pl.BlockSpec((rb, lane), lambda j, i, fl: (0, j)),
            ),
        ),
        compiler_params=pltpu.CompilerParams(
            # Row axis is "arbitrary": the secondary (mask) block is resident
            # across it and written only at row tile 0.  Column axis is safely
            # parallel (disjoint output blocks per j).
            dimension_semantics=("parallel", "arbitrary"),
            vmem_limit_bytes=vmem_limit,
        ),
    )(flag, a_p, b_p)

    return (_unprep(a_out, rows_a, width, pack),
            _unprep(b_out, rows_b, width, pack))


_MASK_FUSE_LIMIT = 2 << 20  # max bytes of mask per resident block before unfusing


def _pair_random_hflip_impl(img, mask, flag, mask_fuse_limit=_MASK_FUSE_LIMIT):
    """img: (N, C, H, W); mask: (Nm, Cm, H, W); flag: int array, nonzero => flip
    both along the last axis.  Returns (img_out, {"mask": mask_out})."""
    flag = flag.reshape(1).astype(jnp.int32)
    n, c, h, w = img.shape
    nm, cm, hm, wm = mask.shape
    assert w == wm and h == hm, "img and mask must share spatial dims"

    img2d = img.reshape(n * c * h, w)
    mask2d = mask.reshape(nm * cm * hm, w)

    ncols, lane, _, _, pack = _lane_plan(w)
    mask_block_bytes = (_round_up(mask2d.shape[0], pack) // pack) * lane \
        * mask.dtype.itemsize

    if mask_block_bytes <= mask_fuse_limit:
        # One fused pallas_call: the mask rides along as a VMEM-resident block,
        # hiding its tiny DMA under the image tiles and saving a second launch.
        img_o, mask_o = _pair_hflip_2d(img2d, mask2d, flag)
    else:
        # Very large mask: route it through the row-tiled (primary) path too.
        dummy = jnp.zeros((1, w), img.dtype)
        img_o, _ = _pair_hflip_2d(img2d, dummy, flag)
        mask_o, _ = _pair_hflip_2d(mask2d, dummy, flag)

    return img_o.reshape(img.shape), {"mask": mask_o.reshape(mask.shape)}


pair_random_hflip = jax.jit(
    lambda img, mask, flag: _pair_random_hflip_impl(img, mask, flag))


class PairRandomHorizontalFlipPallas:
    """Mirror of the PyTorch module: with probability p flip both the image and
    kwargs['mask'] horizontally; otherwise pass through.  `torch.rand(1) < p`
    is reproduced with jax.random in the wrapper; the flip / pass-through copy
    runs inside the fused Pallas kernel."""

    def __init__(self, p=0.5):
        self.p = p

    def __call__(self, img, key, **kwargs):
        u = jax.random.uniform(key, ())
        flag = (u < self.p).astype(jnp.int32).reshape(1)
        img_out, out = pair_random_hflip(img, kwargs["mask"], flag)
        new_kwargs = dict(kwargs)
        new_kwargs["mask"] = out["mask"]
        return img_out, new_kwargs


if __name__ == "__main__":
    key = jax.random.PRNGKey(0)
    k_img, k_mask, k_flip = jax.random.split(key, 3)

    flip_flag = jnp.array([1], dtype=jnp.int32)
    keep_flag = jnp.array([0], dtype=jnp.int32)

    # --- small W (lane-packing path): W = 16 ------------------------------
    n, c, h, w = 2, 4, 16, 16
    img = jax.random.normal(k_img, (n, c, h, w), dtype=jnp.float32)
    mask = jax.random.randint(k_mask, (n, 1, h, w), 0, 10, dtype=jnp.int32)

    img_f, kw_f = pair_random_hflip(img, mask, flip_flag)
    img_k, kw_k = pair_random_hflip(img, mask, keep_flag)
    jax.block_until_ready((img_f, img_k))
    assert jnp.array_equal(img_f, jnp.flip(img, axis=-1)), "flip img (W=16)"
    assert jnp.array_equal(kw_f["mask"], jnp.flip(mask, axis=-1)), "flip mask (W=16)"
    assert jnp.array_equal(img_k, img), "keep img (W=16)"
    assert jnp.array_equal(kw_k["mask"], mask), "keep mask (W=16)"

    # --- W multiple of 128 (flag-dependent mirrored column DMA): W = 256 ---
    img2 = jax.random.normal(k_img, (1, 2, 8, 256), dtype=jnp.float32)
    mask2 = jax.random.randint(k_mask, (1, 1, 8, 256), 0, 7, dtype=jnp.int32)
    img2_f, kw2_f = pair_random_hflip(img2, mask2, flip_flag)
    img2_k, kw2_k = pair_random_hflip(img2, mask2, keep_flag)
    jax.block_until_ready((img2_f, img2_k))
    assert jnp.array_equal(img2_f, jnp.flip(img2, axis=-1)), "flip img (W=256)"
    assert jnp.array_equal(kw2_f["mask"], jnp.flip(mask2, axis=-1)), "flip mask (W=256)"
    assert jnp.array_equal(img2_k, img2), "keep img (W=256)"
    assert jnp.array_equal(kw2_k["mask"], mask2), "keep mask (W=256)"

    # --- odd width fallback (pad to 128 + correction roll): W = 24 --------
    img3 = jax.random.normal(k_img, (1, 3, 8, 24), dtype=jnp.float32)
    mask3 = jax.random.randint(k_mask, (1, 1, 8, 24), 0, 5, dtype=jnp.int32)
    img3_f, kw3_f = pair_random_hflip(img3, mask3, flip_flag)
    img3_k, kw3_k = pair_random_hflip(img3, mask3, keep_flag)
    jax.block_until_ready((img3_f, img3_k))
    assert jnp.array_equal(img3_f, jnp.flip(img3, axis=-1)), "flip img (W=24)"
    assert jnp.array_equal(kw3_f["mask"], jnp.flip(mask3, axis=-1)), "flip mask (W=24)"
    assert jnp.array_equal(img3_k, img3), "keep img (W=24)"
    assert jnp.array_equal(kw3_k["mask"], mask3), "keep mask (W=24)"

    # --- rows that need padding to the lane-packing factor ----------------
    img4 = jax.random.normal(k_img, (1, 3, 5, 16), dtype=jnp.float32)
    mask4 = jax.random.randint(k_mask, (1, 1, 5, 16), 0, 5, dtype=jnp.int32)
    img4_f, kw4_f = pair_random_hflip(img4, mask4, flip_flag)
    jax.block_until_ready(img4_f)
    assert jnp.array_equal(img4_f, jnp.flip(img4, axis=-1)), "flip img (ragged)"
    assert jnp.array_equal(kw4_f["mask"], jnp.flip(mask4, axis=-1)), "flip mask (ragged)"

    # --- forced unfused (huge-mask) code path ------------------------------
    img5_f, kw5_f = _pair_random_hflip_impl(img, mask, flip_flag, mask_fuse_limit=0)
    jax.block_until_ready(img5_f)
    assert jnp.array_equal(img5_f, jnp.flip(img, axis=-1)), "unfused img"
    assert jnp.array_equal(kw5_f["mask"], jnp.flip(mask, axis=-1)), "unfused mask"

    # --- module-level check (random draw, like the PyTorch forward) --------
    module = PairRandomHorizontalFlipPallas(p=0.5)
    img_out, kwargs_out = module(img, k_flip, mask=mask)
    jax.block_until_ready((img_out, kwargs_out["mask"]))
    do_flip = jax.random.uniform(k_flip, ()) < 0.5
    img_ref = jnp.where(do_flip, jnp.flip(img, axis=-1), img)
    mask_ref = jnp.where(do_flip, jnp.flip(mask, axis=-1), mask)
    assert jnp.array_equal(img_out, img_ref), "module img mismatch"
    assert jnp.array_equal(kwargs_out["mask"], mask_ref), "module mask mismatch"

    print("KERNEL_OK")
</pallas_src>

<mosaic_0001>
module attributes {stable_mosaic.version = 11 : i64} {
  func.func @_pair_hflip_kernel(%arg0: i32, %arg1: i32, %arg2: memref<1xi32, #tpu.memory_space<smem>>, %arg3: memref<16x128xf32, #tpu.memory_space<vmem>>, %arg4: memref<4x128xi32, #tpu.memory_space<vmem>>, %arg5: memref<16x128xf32, #tpu.memory_space<vmem>>, %arg6: memref<4x128xi32, #tpu.memory_space<vmem>>) attributes {dimension_semantics = [#tpu.dimension_semantics<parallel>, #tpu.dimension_semantics<arbitrary>], iteration_bounds = array<i64: 1, 1>, scalar_prefetch = 1 : i64, scratch_operands = 0 : i64, tpu.core_type = #tpu.core_type<tc>, window_params = [{transform_indices = @transform_0, window_bounds = array<i64: 16, 128>}, {transform_indices = @transform_1, window_bounds = array<i64: 4, 128>}, {transform_indices = @transform_2, window_bounds = array<i64: 16, 128>}, {transform_indices = @transform_3, window_bounds = array<i64: 4, 128>}]} {
    %c0 = arith.constant 0 : index
    %0 = memref.load %arg2[%c0] : memref<1xi32, #tpu.memory_space<smem>>
    %c0_i32 = arith.constant 0 : i32
    %1 = arith.cmpi ne, %0, %c0_i32 : i32
    %true = arith.constant true
    %2 = arith.xori %1, %true : i1
    %c0_i32_0 = arith.constant 0 : i32
    %3 = arith.cmpi eq, %arg1, %c0_i32_0 : i32
    %4 = arith.extui %1 : i1 to i32
    %c0_i32_1 = arith.constant 0 : i32
    %5 = arith.cmpi ne, %4, %c0_i32_1 : i32
    scf.if %5 {
      %c0_5 = arith.constant 0 : index
      %c0_6 = arith.constant 0 : index
      %14 = vector.load %arg3[%c0_5, %c0_6] : memref<16x128xf32, #tpu.memory_space<vmem>>, vector<16x128xf32>
      %15 = tpu.iota {dimensions = array<i32: 1>} : vector<16x128xi32>
      %c1_i32 = arith.constant 1 : i32
      %16 = tpu.dynamic_rotate %15 by %c1_i32 dim 1 : vector<16x128xi32>, i32 -> vector<16x128xi32>
      %c1_i32_7 = arith.constant 1 : i32
      %17 = vector.broadcast %c1_i32_7 : i32 to vector<16x128xi32>
      %18 = arith.addi %15, %17 : vector<16x128xi32>
      %c128_i32 = arith.constant 128 : i32
      %c0_i32_8 = arith.constant 0 : i32
      %19 = arith.cmpi eq, %c128_i32, %c0_i32_8 : i32
      %c1_i32_9 = arith.constant 1 : i32
      %20 = arith.select %19, %c1_i32_9, %c128_i32 : i32
      %21 = vector.broadcast %20 : i32 to vector<16x128xi32>
      %22 = arith.remsi %18, %21 : vector<16x128xi32>
      %c0_i32_10 = arith.constant 0 : i32
      %23 = vector.broadcast %c0_i32_10 : i32 to vector<16x128xi32>
      %24 = arith.cmpi ne, %22, %23 : vector<16x128xi32>
      %c0_i32_11 = arith.constant 0 : i32
      %25 = vector.broadcast %c0_i32_11 : i32 to vector<16x128xi32>
      %26 = arith.cmpi slt, %22, %25 : vector<16x128xi32>
      %c0_i32_12 = arith.constant 0 : i32
      %27 = arith.cmpi slt, %20, %c0_i32_12 : i32
      %28 = vector.broadcast %27 : i1 to vector<16x128xi1>
      %29 = vector.broadcast %28 : vector<16x128xi1> to vector<16x128xi1>
      %30 = arith.xori %26, %29 : vector<16x128xi1>
      %31 = arith.andi %30, %24 : vector<16x128xi1>
      %32 = vector.broadcast %20 : i32 to vector<16x128xi32>
      %33 = arith.addi %22, %32 : vector<16x128xi32>
      %34 = arith.select %31, %33, %22 : vector<16x128xi1>, vector<16x128xi32>
      %35 = arith.cmpi eq, %16, %34 : vector<16x128xi32>
      %c1_i32_13 = arith.constant 1 : i32
      %36 = vector.broadcast %c1_i32_13 : i32 to vector<16x128xi32>
      %37 = arith.andi %15, %36 : vector<16x128xi32>
      %c0_i32_14 = arith.constant 0 : i32
      %38 = vector.broadcast %c0_i32_14 : i32 to vector<16x128xi32>
      %39 = arith.cmpi ne, %37, %38 : vector<16x128xi32>
      %40 = arith.xori %39, %35 : vector<16x128xi1>
      %c1_i32_15 = arith.constant 1 : i32
      %41 = tpu.dynamic_rotate %14 by %c1_i32_15 dim 1 : vector<16x128xf32>, i32 -> vector<16x128xf32>
      %c127_i32 = arith.constant 127 : i32
      %42 = tpu.dynamic_rotate %14 by %c127_i32 dim 1 : vector<16x128xf32>, i32 -> vector<16x128xf32>
      %43 = arith.select %40, %41, %42 : vector<16x128xi1>, vector<16x128xf32>
      %c2_i32 = arith.constant 2 : i32
      %44 = vector.broadcast %c2_i32 : i32 to vector<16x128xi32>
      %45 = arith.andi %15, %44 : vector<16x128xi32>
      %c0_i32_16 = arith.constant 0 : i32
      %46 = vector.broadcast %c0_i32_16 : i32 to vector<16x128xi32>
      %47 = arith.cmpi ne, %45, %46 : vector<16x128xi32>
      %48 = arith.xori %47, %35 : vector<16x128xi1>
      %c2_i32_17 = arith.constant 2 : i32
      %49 = tpu.dynamic_rotate %43 by %c2_i32_17 dim 1 : vector<16x128xf32>, i32 -> vector<16x128xf32>
      %c126_i32 = arith.constant 126 : i32
      %50 = tpu.dynamic_rotate %43 by %c126_i32 dim 1 : vector<16x128xf32>, i32 -> vector<16x128xf32>
      %51 = arith.select %48, %49, %50 : vector<16x128xi1>, vector<16x128xf32>
      %c4_i32 = arith.constant 4 : i32
      %52 = vector.broadcast %c4_i32 : i32 to vector<16x128xi32>
      %53 = arith.andi %15, %52 : vector<16x128xi32>
      %c0_i32_18 = arith.constant 0 : i32
      %54 = vector.broadcast %c0_i32_18 : i32 to vector<16x128xi32>
      %55 = arith.cmpi ne, %53, %54 : vector<16x128xi32>
      %56 = arith.xori %55, %35 : vector<16x128xi1>
      %c4_i32_19 = arith.constant 4 : i32
      %57 = tpu.dynamic_rotate %51 by %c4_i32_19 dim 1 : vector<16x128xf32>, i32 -> vector<16x128xf32>
      %c124_i32 = arith.constant 124 : i32
      %58 = tpu.dynamic_rotate %51 by %c124_i32 dim 1 : vector<16x128xf32>, i32 -> vector<16x128xf32>
      %59 = arith.select %56, %57, %58 : vector<16x128xi1>, vector<16x128xf32>
      %c8_i32 = arith.constant 8 : i32
      %60 = vector.broadcast %c8_i32 : i32 to vector<16x128xi32>
      %61 = arith.andi %15, %60 : vector<16x128xi32>
      %c0_i32_20 = arith.constant 0 : i32
      %62 = vector.broadcast %c0_i32_20 : i32 to vector<16x128xi32>
      %63 = arith.cmpi ne, %61, %62 : vector<16x128xi32>
      %64 = arith.xori %63, %35 : vector<16x128xi1>
      %c8_i32_21 = arith.constant 8 : i32
      %65 = tpu.dynamic_rotate %59 by %c8_i32_21 dim 1 : vector<16x128xf32>, i32 -> vector<16x128xf32>
      %c120_i32 = arith.constant 120 : i32
      %66 = tpu.dynamic_rotate %59 by %c120_i32 dim 1 : vector<16x128xf32>, i32 -> vector<16x128xf32>
      %67 = arith.select %64, %65, %66 : vector<16x128xi1>, vector<16x128xf32>
      %c0_22 = arith.constant 0 : index
      %c0_23 = arith.constant 0 : index
      %68 = vector.load %arg5[%c0_22, %c0_23] : memref<16x128xf32, #tpu.memory_space<vmem>>, vector<16x128xf32>
      tpu.vector_store %arg5[%c0_22, %c0_23], %67 {strides = array<i32>} : memref<16x128xf32, #tpu.memory_space<vmem>>, vector<16x128xf32>,
    } else {
    }
    %6 = arith.extui %2 : i1 to i32
    %c0_i32_2 = arith.constant 0 : i32
    %7 = arith.cmpi ne, %6, %c0_i32_2 : i32
    scf.if %7 {
      %c0_5 = arith.constant 0 : index
      %c0_6 = arith.constant 0 : index
      %14 = vector.load %arg3[%c0_5, %c0_6] : memref<16x128xf32, #tpu.memory_space<vmem>>, vector<16x128xf32>
      %c0_7 = arith.constant 0 : index
      %c0_8 = arith.constant 0 : index
      %15 = vector.load %arg5[%c0_7, %c0_8] : memref<16x128xf32, #tpu.memory_space<vmem>>, vector<16x128xf32>
      tpu.vector_store %arg5[%c0_7, %c0_8], %14 {strides = array<i32>} : memref<16x128xf32, #tpu.memory_space<vmem>>, vector<16x128xf32>,
    } else {
    }
    %8 = arith.andi %1, %3 : i1
    %9 = arith.extui %8 : i1 to i32
    %c0_i32_3 = arith.constant 0 : i32
    %10 = arith.cmpi ne, %9, %c0_i32_3 : i32
    scf.if %10 {
      %c0_5 = arith.constant 0 : index
      %c0_6 = arith.constant 0 : index
      %14 = vector.load %arg4[%c0_5, %c0_6] : memref<4x128xi32, #tpu.memory_space<vmem>>, vector<4x128xi32>
      %15 = tpu.iota {dimensions = array<i32: 1>} : vector<4x128xi32>
      %c1_i32 = arith.constant 1 : i32
      %16 = tpu.dynamic_rotate %15 by %c1_i32 dim 1 : vector<4x128xi32>, i32 -> vector<4x128xi32>
      %c1_i32_7 = arith.constant 1 : i32
      %17 = vector.broadcast %c1_i32_7 : i32 to vector<4x128xi32>
      %18 = arith.addi %15, %17 : vector<4x128xi32>
      %c128_i32 = arith.constant 128 : i32
      %c0_i32_8 = arith.constant 0 : i32
      %19 = arith.cmpi eq, %c128_i32, %c0_i32_8 : i32
      %c1_i32_9 = arith.constant 1 : i32
      %20 = arith.select %19, %c1_i32_9, %c128_i32 : i32
      %21 = vector.broadcast %20 : i32 to vector<4x128xi32>
      %22 = arith.remsi %18, %21 : vector<4x128xi32>
      %c0_i32_10 = arith.constant 0 : i32
      %23 = vector.broadcast %c0_i32_10 : i32 to vector<4x128xi32>
      %24 = arith.cmpi ne, %22, %23 : vector<4x128xi32>
      %c0_i32_11 = arith.constant 0 : i32
      %25 = vector.broadcast %c0_i32_11 : i32 to vector<4x128xi32>
      %26 = arith.cmpi slt, %22, %25 : vector<4x128xi32>
      %c0_i32_12 = arith.constant 0 : i32
      %27 = arith.cmpi slt, %20, %c0_i32_12 : i32
      %28 = vector.broadcast %27 : i1 to vector<4x128xi1>
      %29 = vector.broadcast %28 : vector<4x128xi1> to vector<4x128xi1>
      %30 = arith.xori %26, %29 : vector<4x128xi1>
      %31 = arith.andi %30, %24 : vector<4x128xi1>
      %32 = vector.broadcast %20 : i32 to vector<4x128xi32>
      %33 = arith.addi %22, %32 : vector<4x128xi32>
      %34 = arith.select %31, %33, %22 : vector<4x128xi1>, vector<4x128xi32>
      %35 = arith.cmpi eq, %16, %34 : vector<4x128xi32>
      %c1_i32_13 = arith.constant 1 : i32
      %36 = vector.broadcast %c1_i32_13 : i32 to vector<4x128xi32>
      %37 = arith.andi %15, %36 : vector<4x128xi32>
      %c0_i32_14 = arith.constant 0 : i32
      %38 = vector.broadcast %c0_i32_14 : i32 to vector<4x128xi32>
      %39 = arith.cmpi ne, %37, %38 : vector<4x128xi32>
      %40 = arith.xori %39, %35 : vector<4x128xi1>
      %c1_i32_15 = arith.constant 1 : i32
      %41 = tpu.dynamic_rotate %14 by %c1_i32_15 dim 1 : vector<4x128xi32>, i32 -> vector<4x128xi32>
      %c127_i32 = arith.constant 127 : i32
      %42 = tpu.dynamic_rotate %14 by %c127_i32 dim 1 : vector<4x128xi32>, i32 -> vector<4x128xi32>
      %43 = arith.select %40, %41, %42 : vector<4x128xi1>, vector<4x128xi32>
      %c2_i32 = arith.constant 2 : i32
      %44 = vector.broadcast %c2_i32 : i32 to vector<4x128xi32>
      %45 = arith.andi %15, %44 : vector<4x128xi32>
      %c0_i32_16 = arith.constant 0 : i32
      %46 = vector.broadcast %c0_i32_16 : i32 to vector<4x128xi32>
      %47 = arith.cmpi ne, %45, %46 : vector<4x128xi32>
      %48 = arith.xori %47, %35 : vector<4x128xi1>
      %c2_i32_17 = arith.constant 2 : i32
      %49 = tpu.dynamic_rotate %43 by %c2_i32_17 dim 1 : vector<4x128xi32>, i32 -> vector<4x128xi32>
      %c126_i32 = arith.constant 126 : i32
      %50 = tpu.dynamic_rotate %43 by %c126_i32 dim 1 : vector<4x128xi32>, i32 -> vector<4x128xi32>
      %51 = arith.select %48, %49, %50 : vector<4x128xi1>, vector<4x128xi32>
      %c4_i32 = arith.constant 4 : i32
      %52 = vector.broadcast %c4_i32 : i32 to vector<4x128xi32>
      %53 = arith.andi %15, %52 : vector<4x128xi32>
      %c0_i32_18 = arith.constant 0 : i32
      %54 = vector.broadcast %c0_i32_18 : i32 to vector<4x128xi32>
      %55 = arith.cmpi ne, %53, %54 : vector<4x128xi32>
      %56 = arith.xori %55, %35 : vector<4x128xi1>
      %c4_i32_19 = arith.constant 4 : i32
      %57 = tpu.dynamic_rotate %51 by %c4_i32_19 dim 1 : vector<4x128xi32>, i32 -> vector<4x128xi32>
      %c124_i32 = arith.constant 124 : i32
      %58 = tpu.dynamic_rotate %51 by %c124_i32 dim 1 : vector<4x128xi32>, i32 -> vector<4x128xi32>
      %59 = arith.select %56, %57, %58 : vector<4x128xi1>, vector<4x128xi32>
      %c8_i32 = arith.constant 8 : i32
      %60 = vector.broadcast %c8_i32 : i32 to vector<4x128xi32>
      %61 = arith.andi %15, %60 : vector<4x128xi32>
      %c0_i32_20 = arith.constant 0 : i32
      %62 = vector.broadcast %c0_i32_20 : i32 to vector<4x128xi32>
      %63 = arith.cmpi ne, %61, %62 : vector<4x128xi32>
      %64 = arith.xori %63, %35 : vector<4x128xi1>
      %c8_i32_21 = arith.constant 8 : i32
      %65 = tpu.dynamic_rotate %59 by %c8_i32_21 dim 1 : vector<4x128xi32>, i32 -> vector<4x128xi32>
      %c120_i32 = arith.constant 120 : i32
      %66 = tpu.dynamic_rotate %59 by %c120_i32 dim 1 : vector<4x128xi32>, i32 -> vector<4x128xi32>
      %67 = arith.select %64, %65, %66 : vector<4x128xi1>, vector<4x128xi32>
      %c0_22 = arith.constant 0 : index
      %c0_23 = arith.constant 0 : index
      %68 = vector.load %arg6[%c0_22, %c0_23] : memref<4x128xi32, #tpu.memory_space<vmem>>, vector<4x128xi32>
      tpu.vector_store %arg6[%c0_22, %c0_23], %67 {strides = array<i32>} : memref<4x128xi32, #tpu.memory_space<vmem>>, vector<4x128xi32>,
    } else {
    }
    %11 = arith.andi %2, %3 : i1
    %12 = arith.extui %11 : i1 to i32
    %c0_i32_4 = arith.constant 0 : i32
    %13 = arith.cmpi ne, %12, %c0_i32_4 : i32
    scf.if %13 {
      %c0_5 = arith.constant 0 : index
      %c0_6 = arith.constant 0 : index
      %14 = vector.load %arg4[%c0_5, %c0_6] : memref<4x128xi32, #tpu.memory_space<vmem>>, vector<4x128xi32>
      %c0_7 = arith.constant 0 : index
      %c0_8 = arith.constant 0 : index
      %15 = vector.load %arg6[%c0_7, %c0_8] : memref<4x128xi32, #tpu.memory_space<vmem>>, vector<4x128xi32>
      tpu.vector_store %arg6[%c0_7, %c0_8], %14 {strides = array<i32>} : memref<4x128xi32, #tpu.memory_space<vmem>>, vector<4x128xi32>,
    } else {
    }
    return
  }
  func.func @transform_0(%arg0: i32, %arg1: i32, %arg2: memref<1xi32, #tpu.memory_space<smem>>) -> (i32, i32) {
    %c0 = arith.constant 0 : index
    %0 = memref.load %arg2[%c0] : memref<1xi32, #tpu.memory_space<smem>>
    %c0_i32 = arith.constant 0 : i32
    %1 = arith.cmpi ne, %0, %c0_i32 : i32
    %2 = arith.extui %1 : i1 to i32
    %c0_i32_0 = arith.constant 0 : i32
    %3 = arith.subi %c0_i32_0, %arg0 : i32
    %4 = arith.muli %2, %3 : i32
    %c1_i32 = arith.constant 1 : i32
    %5 = arith.subi %c1_i32, %2 : i32
    %6 = arith.muli %5, %arg0 : i32
    %7 = arith.addi %4, %6 : i32
    %c0_i32_1 = arith.constant 0 : i32
    return %arg1, %7 : i32, i32
  }
  func.func @transform_1(%arg0: i32, %arg1: i32, %arg2: memref<1xi32, #tpu.memory_space<smem>>) -> (i32, i32) {
    %c0 = arith.constant 0 : index
    %0 = memref.load %arg2[%c0] : memref<1xi32, #tpu.memory_space<smem>>
    %c0_i32 = arith.constant 0 : i32
    %1 = arith.cmpi ne, %0, %c0_i32 : i32
    %2 = arith.extui %1 : i1 to i32
    %c0_i32_0 = arith.constant 0 : i32
    %3 = arith.subi %c0_i32_0, %arg0 : i32
    %4 = arith.muli %2, %3 : i32
    %c1_i32 = arith.constant 1 : i32
    %5 = arith.subi %c1_i32, %2 : i32
    %6 = arith.muli %5, %arg0 : i32
    %7 = arith.addi %4, %6 : i32
    %c0_i32_1 = arith.constant 0 : i32
    %c0_i32_2 = arith.constant 0 : i32
    return %c0_i32_1, %7 : i32, i32
  }
  func.func @transform_2(%arg0: i32, %arg1: i32, %arg2: memref<1xi32, #tpu.memory_space<smem>>) -> (i32, i32) {
    %c0_i32 = arith.constant 0 : i32
    return %arg1, %arg0 : i32, i32
  }
  func.func @transform_3(%arg0: i32, %arg1: i32, %arg2: memref<1xi32, #tpu.memory_space<smem>>) -> (i32, i32) {
    %c0_i32 = arith.constant 0 : i32
    %c0_i32_0 = arith.constant 0 : i32
    return %c0_i32, %arg0 : i32, i32
  }
}

</mosaic_0001>

<llo_original>
// kernel: _lambda_.1
$region0: #{_lambda_.1}
  #allocation0 [shape = 'u32[]', space=smem, size = 0x4, offset = 0x4, fixed_abs, tag = 'smem constant byte address 0x4 - core index']
  #allocation1 [shape = 'u32[144,128]{1,0:T(1,128)}', space=vmem, size = 0x12000, scoped, tag = 'internal scratch']
  #allocation2 [shape = 's32[1]{0}', space=sflag, size = 0x4, scoped, tag = 'scoped memory for _lambda_.1']
  #allocation3 [shape = 's32[1]{0:T(128)S(6)}', space=smem, size = 0x200, scoped, tag = 'prefetched SMEM operand 0']
  %s0 = inlined_call_operand.<no memory space> [shape: s32[1], index: 0, kind: input, shape index: {}]
  %s1 = inlined_call_operand.vmem [shape: f32[16,128], index: 1, kind: input, shape index: {}]
  %s2 = inlined_call_operand.vmem [shape: s32[4,128], index: 2, kind: input, shape index: {}]
  %s3 = inlined_call_operand.vmem [shape: f32[16,128], index: 3, kind: output, shape index: {0}]
  %s4 = inlined_call_operand.vmem [shape: s32[4,128], index: 4, kind: output, shape index: {1}]
  %5 = xla_tuple %s3, %s4
  %s6 = sld [smem:[#allocation0]]
  $region42: #{_lambda_.1} parent=0
    _
  %s8 = ssub.s32 1, %s6
  %s9 = scalar_select 0, %s8, %s6
  %10 = sst [smem:[#allocation3]] %s0
  // Predicated region
  $region2: #{_lambda_.1} parent=0 // pred_check
    _
  $region3: #{_lambda_.1} parent=0 // pred_check_branch
    %12 = sbr.rel (0) target = $region5
  $region4: #{_lambda_.1} parent=0 // pred_region
    %s13 = sld [smem:[#allocation3]]
    %p14 = scmp.ne.s32.totalorder %s13, 0
    %s15 = scalar_select %p14, 1, 0
    %s16 = ssub.s32 0, 0
    %s17 = smul.u32 %s15, %s16
    %s18 = ssub.s32 1, %s15
    %s19 = smul.u32 %s18, 0
    %s20 = sadd.s32 %s17, %s19
    %p21 = scmp.lt.s32.totalorder %s20, 0
    %s22 = scalar_select %p21, %s20, 0
    %s23 = smul.addr %s22, 8
    %s24 = scalar_lea.vmem %s1, %s23
    %s25 = sld [smem:[#allocation3]]
    %p26 = scmp.ne.s32.totalorder %s25, 0
    %s27 = scalar_select %p26, 1, 0
    %s28 = ssub.s32 0, 0
    %s29 = smul.u32 %s27, %s28
    %s30 = ssub.s32 1, %s27
    %s31 = smul.u32 %s30, 0
    %s32 = sadd.s32 %s29, %s31
  $region5: #{_lambda_.1} parent=0 // pred_fallthru
    _
  // Predicated region
  $region6: #{_lambda_.1} parent=0 // pred_check
    _
  $region7: #{_lambda_.1} parent=0 // pred_check_branch
    %34 = sbr.rel (0) target = $region9
  $region8: #{_lambda_.1} parent=0 // pred_region
    %s35 = sld [smem:[#allocation3]]
    %p36 = scmp.ne.s32.totalorder %s35, 0
    %s37 = scalar_select %p36, 1, 0
    %s38 = ssub.s32 0, 0
    %s39 = smul.u32 %s37, %s38
    %s40 = ssub.s32 1, %s37
    %s41 = smul.u32 %s40, 0
    %s42 = sadd.s32 %s39, %s41
    %p43 = scmp.lt.s32.totalorder %s42, 0
    %s44 = scalar_select %p43, %s42, 0
    %s45 = smul.addr %s44, 4
    %s46 = scalar_lea.vmem %s2, %s45
    %s47 = sld [smem:[#allocation3]]
    %p48 = scmp.ne.s32.totalorder %s47, 0
    %s49 = scalar_select %p48, 1, 0
    %s50 = ssub.s32 0, 0
    %s51 = smul.u32 %s49, %s50
    %s52 = ssub.s32 1, %s49
    %s53 = smul.u32 %s52, 0
    %s54 = sadd.s32 %s51, %s53
  $region9: #{_lambda_.1} parent=0 // pred_fallthru
    _
  %s55 = sld [smem:[#allocation3]]
  %p56 = scmp.ne.s32.totalorder %s55, 0
  %s57 = scalar_select %p56, 1, 0
  %s58 = ssub.s32 0, 0
  %s59 = smul.u32 %s57, %s58
  %s60 = ssub.s32 1, %s57
  %s61 = smul.u32 %s60, 0
  %s62 = sadd.s32 %s59, %s61
  %p63 = scmp.lt.s32.totalorder %s62, 0
  %s64 = scalar_select %p63, %s62, 0
  %s65 = smul.addr %s64, 8
  %s66 = scalar_lea.vmem %s1, %s65
  %s67 = sld [smem:[#allocation3]]
  %p68 = scmp.ne.s32.totalorder %s67, 0
  %s69 = scalar_select %p68, 1, 0
  %s70 = ssub.s32 0, 0
  %s71 = smul.u32 %s69, %s70
  %s72 = ssub.s32 1, %s69
  %s73 = smul.u32 %s72, 0
  %s74 = sadd.s32 %s71, %s73
  %p75 = scmp.lt.s32.totalorder %s74, 0
  %s76 = scalar_select %p75, %s74, 0
  %s77 = smul.addr %s76, 4
  %s78 = scalar_lea.vmem %s2, %s77
  %s79 = sld [smem:[#allocation3]]
  %p80 = scmp.ne.s32.totalorder %s79, 0
  %s81 = scalar_select %p80, 1, 0
  %s82 = ssub.s32 0, 0
  %s83 = smul.u32 %s81, %s82
  %s84 = ssub.s32 1, %s81
  %s85 = smul.u32 %s84, 0
  %s86 = sadd.s32 %s83, %s85
  %p87 = scmp.lt.s32.totalorder %s86, 0
  %s88 = scalar_select %p87, %s86, 0
  %s89 = smul.addr %s88, 8
  %s90 = scalar_lea.vmem %s1, %s89
  %s91 = sld [smem:[#allocation3]]
  %p92 = scmp.ne.s32.totalorder %s91, 0
  %s93 = scalar_select %p92, 1, 0
  %s94 = ssub.s32 0, 0
  %s95 = smul.u32 %s93, %s94
  %s96 = ssub.s32 1, %s93
  %s97 = smul.u32 %s96, 0
  %s98 = sadd.s32 %s95, %s97
  %s99 = sld [smem:[#allocation3]]
  %p100 = scmp.ne.s32.totalorder %s99, 0
  %s101 = scalar_select %p100, 1, 0
  %s102 = ssub.s32 0, 0
  %s103 = smul.u32 %s101, %s102
  %s104 = ssub.s32 1, %s101
  %s105 = smul.u32 %s104, 0
  %s106 = sadd.s32 %s103, %s105
  %p107 = scmp.lt.s32.totalorder %s106, 0
  %s108 = scalar_select %p107, %s106, 0
  %s109 = smul.addr %s108, 4
  %s110 = scalar_lea.vmem %s2, %s109
  %s111 = sld [smem:[#allocation3]]
  %p112 = scmp.ne.s32.totalorder %s111, 0
  %s113 = scalar_select %p112, 1, 0
  %s114 = ssub.s32 0, 0
  %s115 = smul.u32 %s113, %s114
  %s116 = ssub.s32 1, %s113
  %s117 = smul.u32 %s116, 0
  %s118 = sadd.s32 %s115, %s117
  %s119 = sld [smem:[#allocation3]]
  %p120 = scmp.ne.s32.totalorder %s119, 0
  %p121 = scmp.eq.s32.totalorder %s119, 0
  %p122 = scmp.eq.s32.totalorder 0, 0
  // Predicated region
  $region10: #{_lambda_.1} parent=0 // pred_check
    %p123 = pneg %p120
  $region11: #{_lambda_.1} parent=0 // pred_check_branch
    %125 = sbr.rel (%p123) target = $region13
  $region12: #{_lambda_.1} parent=0 // pred_region
    %v126 = vld [vmem:[%s90] sm:$0xff]
    %v127 = vld [vmem:[%s90 + $0x8] sm:$0xff]
    %v128 = vlaneseq
    %v129 = vand.u32 %v128, 127
    %130 = vrot.lane.b32.xlu0 %v129, 1
    %v131 = vpop.permute.xlu0 %130
    %v132 = vadd.s32 %v129, 1
    %vm133 = vcmp.lt.s32.totalorder %v132, 0
    %v134 = vsub.s32 0, %v132
    %v135 = vsel %vm133, %v134, %v132
    %v136 = vshrl.u32 %v135, 7
    %v137 = vand.u32 %v135, 127
    %v138 = vsub.s32 0, %v137
    %v139 = vsel %vm133, %v138, %v137
    %vm140 = vcmp.ne.s32.totalorder %v139, 0
    %vm141 = vcmp.lt.s32.totalorder %v139, 0
    %vm142 = vmand %vm141, %vm140
    %v143 = vadd.s32 %v139, 128
    %v144 = vsel %vm142, %v143, %v139
    %vm145 = vcmp.eq.s32.totalorder %v131, %v144
    %v146 = vand.u32 %v129, 1
    %vm147 = vcmp.ne.s32.totalorder %v146, 0
    %vm148 = vmxor %vm147, %vm145
    %149 = vrot.lane.b32.xlu0 %v126, 1
    %v150 = vpop.permute.xlu0 %149
    %151 = vrot.lane.b32.xlu0 %v127, 1
    %v152 = vpop.permute.xlu0 %151
    %153 = vrot.lane.b32.xlu0 %v126, 127
    %v154 = vpop.permute.xlu0 %153
    %155 = vrot.lane.b32.xlu0 %v127, 127
    %v156 = vpop.permute.xlu0 %155
    %v157 = vsel %vm148, %v150, %v154
    %v158 = vsel %vm148, %v152, %v156
    %v159 = vand.u32 %v129, 2
    %vm160 = vcmp.ne.s32.totalorder %v159, 0
    %vm161 = vmxor %vm160, %vm145
    %162 = vrot.lane.b32.xlu0 %v157, 2
    %v163 = vpop.permute.xlu0 %162
    %164 = vrot.lane.b32.xlu0 %v158, 2
    %v165 = vpop.permute.xlu0 %164
    %166 = vrot.lane.b32.xlu0 %v157, 126
    %v167 = vpop.permute.xlu0 %166
    %168 = vrot.lane.b32.xlu0 %v158, 126
    %v169 = vpop.permute.xlu0 %168
    %v170 = vsel %vm161, %v163, %v167
    %v171 = vsel %vm161, %v165, %v169
    %v172 = vand.u32 %v129, 4
    %vm173 = vcmp.ne.s32.totalorder %v172, 0
    %vm174 = vmxor %vm173, %vm145
    %175 = vrot.lane.b32.xlu0 %v170, 4
    %v176 = vpop.permute.xlu0 %175
    %177 = vrot.lane.b32.xlu0 %v171, 4
    %v178 = vpop.permute.xlu0 %177
    %179 = vrot.lane.b32.xlu0 %v170, 124
    %v180 = vpop.permute.xlu0 %179
    %181 = vrot.lane.b32.xlu0 %v171, 124
    %v182 = vpop.permute.xlu0 %181
    %v183 = vsel %vm174, %v176, %v180
    %v184 = vsel %vm174, %v178, %v182
    %v185 = vand.u32 %v129, 8
    %vm186 = vcmp.ne.s32.totalorder %v185, 0
    %vm187 = vmxor %vm186, %vm145
    %188 = vrot.lane.b32.xlu0 %v183, 8
    %v189 = vpop.permute.xlu0 %188
    %190 = vrot.lane.b32.xlu0 %v184, 8
    %v191 = vpop.permute.xlu0 %190
    %192 = vrot.lane.b32.xlu0 %v183, 120
    %v193 = vpop.permute.xlu0 %192
    %194 = vrot.lane.b32.xlu0 %v184, 120
    %v195 = vpop.permute.xlu0 %194
    %v196 = vsel %vm187, %v189, %v193
    %v197 = vsel %vm187, %v191, %v195
    %198 = vst [vmem:[%s3] sm:$0xff] %v196
    %199 = vst [vmem:[%s3 + $0x8] sm:$0xff] %v197
  $region13: #{_lambda_.1} parent=0 // pred_fallthru
    _
  // Predicated region
  $region14: #{_lambda_.1} parent=0 // pred_check
    %p200 = pneg %p121
  $region15: #{_lambda_.1} parent=0 // pred_check_branch
    %202 = sbr.rel (%p200) target = $region17
  $region16: #{_lambda_.1} parent=0 // pred_region
    %v203 = vld [vmem:[%s90] sm:$0xff]
    %v204 = vld [vmem:[%s90 + $0x8] sm:$0xff]
    %205 = vst [vmem:[%s3] sm:$0xff] %v203
    %206 = vst [vmem:[%s3 + $0x8] sm:$0xff] %v204
  $region17: #{_lambda_.1} parent=0 // pred_fallthru
    _
  %p207 = pnand %p120, %p122
  %p208 = pneg %p207
  // Predicated region
  $region18: #{_lambda_.1} parent=0 // pred_check
    _
  $region19: #{_lambda_.1} parent=0 // pred_check_branch
    %210 = sbr.rel (%p207) target = $region21
  $region20: #{_lambda_.1} parent=0 // pred_region
    %v211 = vld [vmem:[%s110] sm:$0xf]
    %v212 = vlaneseq
    %v213 = vand.u32 %v212, 127
    %214 = vrot.lane.b32.xlu0 %v213, 1
    %v215 = vpop.permute.xlu0 %214
    %v216 = vadd.s32 %v213, 1
    %vm217 = vcmp.lt.s32.totalorder %v216, 0
    %v218 = vsub.s32 0, %v216
    %v219 = vsel %vm217, %v218, %v216
    %v220 = vshrl.u32 %v219, 7
    %v221 = vand.u32 %v219, 127
    %v222 = vsub.s32 0, %v221
    %v223 = vsel %vm217, %v222, %v221
    %vm224 = vcmp.ne.s32.totalorder %v223, 0
    %vm225 = vcmp.lt.s32.totalorder %v223, 0
    %vm226 = vmand %vm225, %vm224
    %v227 = vadd.s32 %v223, 128
    %v228 = vsel %vm226, %v227, %v223
    %vm229 = vcmp.eq.s32.totalorder %v215, %v228
    %v230 = vand.u32 %v213, 1
    %vm231 = vcmp.ne.s32.totalorder %v230, 0
    %vm232 = vmxor %vm231, %vm229
    %233 = vrot.lane.b32.xlu0 %v211, 1
    %v234 = vpop.permute.xlu0 %233
    %235 = vrot.lane.b32.xlu0 %v211, 127
    %v236 = vpop.permute.xlu0 %235
    %v237 = vsel %vm232, %v234, %v236
    %v238 = vand.u32 %v213, 2
    %vm239 = vcmp.ne.s32.totalorder %v238, 0
    %vm240 = vmxor %vm239, %vm229
    %241 = vrot.lane.b32.xlu0 %v237, 2
    %v242 = vpop.permute.xlu0 %241
    %243 = vrot.lane.b32.xlu0 %v237, 126
    %v244 = vpop.permute.xlu0 %243
    %v245 = vsel %vm240, %v242, %v244
    %v246 = vand.u32 %v213, 4
    %vm247 = vcmp.ne.s32.totalorder %v246, 0
    %vm248 = vmxor %vm247, %vm229
    %249 = vrot.lane.b32.xlu0 %v245, 4
    %v250 = vpop.permute.xlu0 %249
    %251 = vrot.lane.b32.xlu0 %v245, 124
    %v252 = vpop.permute.xlu0 %251
    %v253 = vsel %vm248, %v250, %v252
    %v254 = vand.u32 %v213, 8
    %vm255 = vcmp.ne.s32.totalorder %v254, 0
    %vm256 = vmxor %vm255, %vm229
    %257 = vrot.lane.b32.xlu0 %v253, 8
    %v258 = vpop.permute.xlu0 %257
    %259 = vrot.lane.b32.xlu0 %v253, 120
    %v260 = vpop.permute.xlu0 %259
    %v261 = vsel %vm256, %v258, %v260
    %262 = vst [vmem:[%s4] sm:$0xf] %v261
  $region21: #{_lambda_.1} parent=0 // pred_fallthru
    _
  %p263 = pnand %p121, %p122
  %p264 = pneg %p263
  // Predicated region
  $region22: #{_lambda_.1} parent=0 // pred_check
    _
  $region23: #{_lambda_.1} parent=0 // pred_check_branch
    %266 = sbr.rel (%p263) target = $region25
  $region24: #{_lambda_.1} parent=0 // pred_region
    %v267 = vld [vmem:[%s110] sm:$0xf]
    %268 = vst [vmem:[%s4] sm:$0xf] %v267
  $region25: #{_lambda_.1} parent=0 // pred_fallthru
    _
  // Predicated region
  $region26: #{_lambda_.1} parent=0 // pred_check
    _
  $region27: #{_lambda_.1} parent=0 // pred_check_branch
    %270 = sbr.rel (0) target = $region29
  $region28: #{_lambda_.1} parent=0 // pred_region
    _
  $region29: #{_lambda_.1} parent=0 // pred_fallthru
    _
  // Predicated region
  $region30: #{_lambda_.1} parent=0 // pred_check
    _
  $region31: #{_lambda_.1} parent=0 // pred_check_branch
    %272 = sbr.rel (0) target = $region33
  $region32: #{_lambda_.1} parent=0 // pred_region
    _
  $region33: #{_lambda_.1} parent=0 // pred_fallthru
    _
  // Predicated region
  $region34: #{_lambda_.1} parent=0 // pred_check
    _
  $region35: #{_lambda_.1} parent=0 // pred_check_branch
    %274 = sbr.rel (0) target = $region37
  $region36: #{_lambda_.1} parent=0 // pred_region
    _
  $region37: #{_lambda_.1} parent=0 // pred_fallthru
    _
  // Predicated region
  $region38: #{_lambda_.1} parent=0 // pred_check
    _
  $region39: #{_lambda_.1} parent=0 // pred_check_branch
    %276 = sbr.rel (0) target = $region41
  $region40: #{_lambda_.1} parent=0 // pred_region
    _
  $region41: #{_lambda_.1} parent=0 // pred_fallthru
    _

</llo_original>
